<compile_context>
chip_gen: v7x
topology: tpu7x:2x2x1
jax: 0.10.0
libtpu: 0.0.40
codegen_flags: <defaults>
</compile_context>

<pallas_src>
import numpy as np
import jax
import jax.numpy as jnp
from jax import lax
from jax.experimental import pallas as pl
from jax.experimental.pallas import tpu as pltpu

_LANE = 128  # TPU lane width (last-dim vector width)


def _patch_len(n, epochs):
    """Same split logic as Gclip_Gsyn.patch_len."""
    base = n // epochs
    lens = [base] * epochs
    for i in range(n - base * epochs):
        lens[i] += 1
    assert sum(lens) == n, "check your epochs"
    return lens


def _round_up(v, m):
    return ((v + m - 1) // m) * m


def _make_kernel(offs, lens, C, T, W, epochs):
    # All patch offsets/lengths are compile-time constants, so every epoch uses
    # a static (mostly 128-aligned) window slice -- no scalar prefetch needed.
    windows = []
    for e in range(epochs):
        off, L = int(offs[e]), int(lens[e])
        ws = max(0, min((off // _LANE) * _LANE, T - W))
        r = off - ws
        assert 0 <= r and r + L <= W, "window does not cover patch"
        windows.append((ws, r, L))

    def kernel(x_ref, o_ref):
        # x_ref: (C, T) VMEM block for the current batch
        # o_ref: (epochs, C, C) VMEM block for the current batch
        # Hoisted constants (JAX does not CSE broadcast_in_dim).
        row_i = lax.broadcasted_iota(jnp.int32, (C, C), 0)
        col_i = lax.broadcasted_iota(jnp.int32, (C, C), 1)
        eye = row_i == col_i
        col_w = lax.broadcasted_iota(jnp.int32, (C, W), 1)

        for e in range(epochs):
            ws, r, L = windows[e]
            # Load only the (C, W) window of this patch from VMEM.
            xw = x_ref[:, ws:ws + W].astype(jnp.float32)
            if r == 0 and L == W:
                mean = jnp.sum(xw, axis=1, keepdims=True) * (1.0 / L)
                xc = xw - mean
            else:
                m = (col_w >= r) & (col_w < r + L)
                xz = jnp.where(m, xw, 0.0)
                mean = jnp.sum(xz, axis=1, keepdims=True) * (1.0 / L)
                xc = jnp.where(m, xw - mean, 0.0)   # centered, 0 outside patch

            # cov[i, j] = sum_t xc[i, t] * xc[j, t]  -- MXU, no transpose.
            # (1/(L-1) normalization cancels in the correlation.)
            cov = lax.dot_general(
                xc, xc,
                dimension_numbers=(((1,), (1,)), ((), ())),
                preferred_element_type=jnp.float32)

            # Variance is exactly cov's diagonal.
            d = jnp.where(eye, cov, 0.0)
            inv_c = lax.rsqrt(jnp.sum(d, axis=1, keepdims=True))   # (C, 1)
            inv_r = lax.rsqrt(jnp.sum(d, axis=0, keepdims=True))   # (1, C)

            # Constant channel => var 0 => rsqrt -> inf -> nan rows/cols,
            # matching np.corrcoef's nan output for that case.
            corr = jnp.clip(cov * inv_c * inv_r, -1.0, 1.0)
            o_ref[e] = corr

    return kernel


def gclip_gsyn(x, epochs):
    """x: (B, C, T) -> (B, epochs, C, C) float32 (np.corrcoef per batch & patch)."""
    B, C, T = x.shape
    epochs = int(epochs)
    lens = _patch_len(T, epochs)
    offs = np.concatenate([[0], np.cumsum(lens)[:-1]]).astype(np.int64)
    max_L = int(max(lens))

    # Smallest 128-multiple window that can hold any patch after rounding its
    # start down to a lane boundary (capped at T for short recordings).
    W = min(T, _round_up(max_L + _LANE - 1, _LANE))

    kernel = _make_kernel(offs, lens, C, T, W, epochs)

    grid_spec = pltpu.PrefetchScalarGridSpec(
        num_scalar_prefetch=0,
        grid=(B,),
        in_specs=[pl.BlockSpec((pl.Squeezed(), C, T), lambda b: (b, 0, 0))],
        out_specs=pl.BlockSpec((pl.Squeezed(), epochs, C, C),
                               lambda b: (b, 0, 0, 0)),
    )

    # VMEM budget: double-buffered (C, T) input block + double-buffered
    # (epochs, C, C) output block + slack for the per-epoch working set.
    itemsize = jnp.dtype(x.dtype).itemsize
    vmem_need = 2 * C * T * itemsize + 2 * epochs * C * C * 4 + (2 << 20)
    cp_kwargs = dict(dimension_semantics=("parallel",))
    if vmem_need > (32 << 20):
        # Raise the scoped-VMEM limit for long recordings (v5e default 16 MiB,
        # v6e/v7x 32 MiB).  Inputs that cannot fit v7x's 64 MiB physical VMEM
        # would need time-axis tiling; not required at these shapes.
        cp_kwargs["vmem_limit_bytes"] = int(min(vmem_need, 100 << 20))

    out = pl.pallas_call(
        kernel,
        out_shape=jax.ShapeDtypeStruct((B, epochs, C, C), jnp.float32),
        grid_spec=grid_spec,
        compiler_params=pltpu.CompilerParams(**cp_kwargs),
    )(x)
    return out


if __name__ == "__main__":
    key = jax.random.PRNGKey(0)
    B, C, T = 2, 4, 16
    epochs = 3                      # -> patch lengths [6, 5, 5] (uneven, like the module)

    x = jax.random.normal(key, (B, C, T), dtype=jnp.float32)

    out = jax.block_until_ready(gclip_gsyn(x, epochs))
    assert out.shape == (B, epochs, C, C)

    # Reference: exact replica of the PyTorch/numpy forward pass semantics.
    xn = np.asarray(x, dtype=np.float64)
    lens = _patch_len(T, epochs)
    offs = np.concatenate([[0], np.cumsum(lens)[:-1]]).astype(int)
    ref = np.zeros((B, epochs, C, C))
    for e in range(epochs):
        for b in range(B):
            ref[b, e] = np.corrcoef(xn[b, :, offs[e]:offs[e] + lens[e]])
    assert np.allclose(np.asarray(out), ref, atol=1e-4), "kernel/reference mismatch"

    print("KERNEL_OK")
</pallas_src>

<mosaic_0001>
module attributes {stable_mosaic.version = 11 : i64} {
  func.func @kernel(%arg0: i32, %arg1: memref<1x4x16xf32, #tpu.memory_space<vmem>>, %arg2: memref<1x3x4x4xf32, #tpu.memory_space<vmem>>) attributes {dimension_semantics = [#tpu.dimension_semantics<parallel>], iteration_bounds = array<i64: 2>, scalar_prefetch = 0 : i64, scratch_operands = 0 : i64, tpu.core_type = #tpu.core_type<tc>, window_params = [{transform_indices = @transform_0, window_bounds = array<i64: 1, 4, 16>}, {transform_indices = @transform_1, window_bounds = array<i64: 1, 3, 4, 4>}]} {
    %0 = tpu.iota {dimensions = array<i32: 0>} : vector<4x4xi32>
    %1 = tpu.iota {dimensions = array<i32: 1>} : vector<4x4xi32>
    %2 = arith.cmpi eq, %0, %1 : vector<4x4xi32>
    %3 = tpu.iota {dimensions = array<i32: 1>} : vector<4x16xi32>
    %c0 = arith.constant 0 : index
    %c0_0 = arith.constant 0 : index
    %c0_1 = arith.constant 0 : index
    %4 = vector.load %arg1[%c0, %c0_0, %c0_1] : memref<1x4x16xf32, #tpu.memory_space<vmem>>, vector<1x4x16xf32>
    %5 = vector.shape_cast %4 : vector<1x4x16xf32> to vector<4x16xf32>
    %c0_i32 = arith.constant 0 : i32
    %6 = vector.broadcast %c0_i32 : i32 to vector<4x16xi32>
    %7 = arith.cmpi sge, %3, %6 : vector<4x16xi32>
    %c6_i32 = arith.constant 6 : i32
    %8 = vector.broadcast %c6_i32 : i32 to vector<4x16xi32>
    %9 = arith.cmpi slt, %3, %8 : vector<4x16xi32>
    %10 = arith.andi %7, %9 : vector<4x16xi1>
    %cst = arith.constant 0.000000e+00 : f32
    %11 = vector.broadcast %cst : f32 to vector<4x16xf32>
    %12 = arith.select %10, %5, %11 : vector<4x16xi1>, vector<4x16xf32>
    %cst_2 = arith.constant dense<0.000000e+00> : vector<4xf32>
    %13 = vector.multi_reduction <add>, %12, %cst_2 [1] : vector<4x16xf32> to vector<4xf32>
    %14 = vector.shape_cast %13 : vector<4xf32> to vector<4x1xf32>
    %cst_3 = arith.constant 0.166666672 : f32
    %15 = vector.broadcast %cst_3 : f32 to vector<4x1xf32>
    %16 = arith.mulf %14, %15 : vector<4x1xf32>
    %17 = vector.broadcast %16 : vector<4x1xf32> to vector<4x16xf32>
    %18 = arith.subf %5, %17 : vector<4x16xf32>
    %cst_4 = arith.constant 0.000000e+00 : f32
    %19 = vector.broadcast %cst_4 : f32 to vector<4x16xf32>
    %20 = arith.select %10, %18, %19 : vector<4x16xi1>, vector<4x16xf32>
    %cst_5 = arith.constant dense<0.000000e+00> : vector<4x4xf32>
    %21 = tpu.matmul %20, %20, %cst_5 {dimension_numbers = #tpu.dot_dimension_numbers<[1], [1], [0], [0], [0, 0, 1, 0], [], []>} : vector<4x16xf32>, vector<4x16xf32>, vector<4x4xf32> -> vector<4x4xf32>
    %cst_6 = arith.constant 0.000000e+00 : f32
    %22 = vector.broadcast %cst_6 : f32 to vector<4x4xf32>
    %23 = arith.select %2, %21, %22 : vector<4x4xi1>, vector<4x4xf32>
    %cst_7 = arith.constant dense<0.000000e+00> : vector<4xf32>
    %24 = vector.multi_reduction <add>, %23, %cst_7 [1] : vector<4x4xf32> to vector<4xf32>
    %25 = vector.shape_cast %24 : vector<4xf32> to vector<4x1xf32>
    %26 = math.rsqrt %25 : vector<4x1xf32>
    %cst_8 = arith.constant dense<0.000000e+00> : vector<4xf32>
    %27 = vector.multi_reduction <add>, %23, %cst_8 [0] : vector<4x4xf32> to vector<4xf32>
    %28 = vector.shape_cast %27 : vector<4xf32> to vector<1x4xf32>
    %29 = math.rsqrt %28 : vector<1x4xf32>
    %30 = vector.broadcast %26 : vector<4x1xf32> to vector<4x4xf32>
    %31 = arith.mulf %21, %30 : vector<4x4xf32>
    %32 = vector.broadcast %29 : vector<1x4xf32> to vector<4x4xf32>
    %33 = arith.mulf %31, %32 : vector<4x4xf32>
    %cst_9 = arith.constant -1.000000e+00 : f32
    %cst_10 = arith.constant 1.000000e+00 : f32
    %34 = vector.broadcast %cst_9 : f32 to vector<4x4xf32>
    %35 = arith.maximumf %34, %33 : vector<4x4xf32>
    %36 = vector.broadcast %cst_10 : f32 to vector<4x4xf32>
    %37 = arith.minimumf %36, %35 : vector<4x4xf32>
    %c0_11 = arith.constant 0 : index
    %c0_12 = arith.constant 0 : index
    %c0_13 = arith.constant 0 : index
    %c0_14 = arith.constant 0 : index
    %38 = vector.load %arg2[%c0_11, %c0_12, %c0_13, %c0_14] : memref<1x3x4x4xf32, #tpu.memory_space<vmem>>, vector<1x1x4x4xf32>
    %39 = vector.shape_cast %38 : vector<1x1x4x4xf32> to vector<4x4xf32>
    %40 = vector.shape_cast %37 : vector<4x4xf32> to vector<1x1x4x4xf32>
    tpu.vector_store %arg2[%c0_11, %c0_12, %c0_13, %c0_14], %40 {strides = array<i32>} : memref<1x3x4x4xf32, #tpu.memory_space<vmem>>, vector<1x1x4x4xf32>,
    %c0_15 = arith.constant 0 : index
    %c0_16 = arith.constant 0 : index
    %c0_17 = arith.constant 0 : index
    %41 = vector.load %arg1[%c0_15, %c0_16, %c0_17] : memref<1x4x16xf32, #tpu.memory_space<vmem>>, vector<1x4x16xf32>
    %42 = vector.shape_cast %41 : vector<1x4x16xf32> to vector<4x16xf32>
    %c6_i32_18 = arith.constant 6 : i32
    %43 = vector.broadcast %c6_i32_18 : i32 to vector<4x16xi32>
    %44 = arith.cmpi sge, %3, %43 : vector<4x16xi32>
    %c11_i32 = arith.constant 11 : i32
    %45 = vector.broadcast %c11_i32 : i32 to vector<4x16xi32>
    %46 = arith.cmpi slt, %3, %45 : vector<4x16xi32>
    %47 = arith.andi %44, %46 : vector<4x16xi1>
    %cst_19 = arith.constant 0.000000e+00 : f32
    %48 = vector.broadcast %cst_19 : f32 to vector<4x16xf32>
    %49 = arith.select %47, %42, %48 : vector<4x16xi1>, vector<4x16xf32>
    %cst_20 = arith.constant dense<0.000000e+00> : vector<4xf32>
    %50 = vector.multi_reduction <add>, %49, %cst_20 [1] : vector<4x16xf32> to vector<4xf32>
    %51 = vector.shape_cast %50 : vector<4xf32> to vector<4x1xf32>
    %cst_21 = arith.constant 2.000000e-01 : f32
    %52 = vector.broadcast %cst_21 : f32 to vector<4x1xf32>
    %53 = arith.mulf %51, %52 : vector<4x1xf32>
    %54 = vector.broadcast %53 : vector<4x1xf32> to vector<4x16xf32>
    %55 = arith.subf %42, %54 : vector<4x16xf32>
    %cst_22 = arith.constant 0.000000e+00 : f32
    %56 = vector.broadcast %cst_22 : f32 to vector<4x16xf32>
    %57 = arith.select %47, %55, %56 : vector<4x16xi1>, vector<4x16xf32>
    %cst_23 = arith.constant dense<0.000000e+00> : vector<4x4xf32>
    %58 = tpu.matmul %57, %57, %cst_23 {dimension_numbers = #tpu.dot_dimension_numbers<[1], [1], [0], [0], [0, 0, 1, 0], [], []>} : vector<4x16xf32>, vector<4x16xf32>, vector<4x4xf32> -> vector<4x4xf32>
    %cst_24 = arith.constant 0.000000e+00 : f32
    %59 = vector.broadcast %cst_24 : f32 to vector<4x4xf32>
    %60 = arith.select %2, %58, %59 : vector<4x4xi1>, vector<4x4xf32>
    %cst_25 = arith.constant dense<0.000000e+00> : vector<4xf32>
    %61 = vector.multi_reduction <add>, %60, %cst_25 [1] : vector<4x4xf32> to vector<4xf32>
    %62 = vector.shape_cast %61 : vector<4xf32> to vector<4x1xf32>
    %63 = math.rsqrt %62 : vector<4x1xf32>
    %cst_26 = arith.constant dense<0.000000e+00> : vector<4xf32>
    %64 = vector.multi_reduction <add>, %60, %cst_26 [0] : vector<4x4xf32> to vector<4xf32>
    %65 = vector.shape_cast %64 : vector<4xf32> to vector<1x4xf32>
    %66 = math.rsqrt %65 : vector<1x4xf32>
    %67 = vector.broadcast %63 : vector<4x1xf32> to vector<4x4xf32>
    %68 = arith.mulf %58, %67 : vector<4x4xf32>
    %69 = vector.broadcast %66 : vector<1x4xf32> to vector<4x4xf32>
    %70 = arith.mulf %68, %69 : vector<4x4xf32>
    %cst_27 = arith.constant -1.000000e+00 : f32
    %cst_28 = arith.constant 1.000000e+00 : f32
    %71 = vector.broadcast %cst_27 : f32 to vector<4x4xf32>
    %72 = arith.maximumf %71, %70 : vector<4x4xf32>
    %73 = vector.broadcast %cst_28 : f32 to vector<4x4xf32>
    %74 = arith.minimumf %73, %72 : vector<4x4xf32>
    %c0_29 = arith.constant 0 : index
    %c1 = arith.constant 1 : index
    %c0_30 = arith.constant 0 : index
    %c0_31 = arith.constant 0 : index
    %75 = vector.load %arg2[%c0_29, %c1, %c0_30, %c0_31] : memref<1x3x4x4xf32, #tpu.memory_space<vmem>>, vector<1x1x4x4xf32>
    %76 = vector.shape_cast %75 : vector<1x1x4x4xf32> to vector<4x4xf32>
    %77 = vector.shape_cast %74 : vector<4x4xf32> to vector<1x1x4x4xf32>
    tpu.vector_store %arg2[%c0_29, %c1, %c0_30, %c0_31], %77 {strides = array<i32>} : memref<1x3x4x4xf32, #tpu.memory_space<vmem>>, vector<1x1x4x4xf32>,
    %c0_32 = arith.constant 0 : index
    %c0_33 = arith.constant 0 : index
    %c0_34 = arith.constant 0 : index
    %78 = vector.load %arg1[%c0_32, %c0_33, %c0_34] : memref<1x4x16xf32, #tpu.memory_space<vmem>>, vector<1x4x16xf32>
    %79 = vector.shape_cast %78 : vector<1x4x16xf32> to vector<4x16xf32>
    %c11_i32_35 = arith.constant 11 : i32
    %80 = vector.broadcast %c11_i32_35 : i32 to vector<4x16xi32>
    %81 = arith.cmpi sge, %3, %80 : vector<4x16xi32>
    %c16_i32 = arith.constant 16 : i32
    %82 = vector.broadcast %c16_i32 : i32 to vector<4x16xi32>
    %83 = arith.cmpi slt, %3, %82 : vector<4x16xi32>
    %84 = arith.andi %81, %83 : vector<4x16xi1>
    %cst_36 = arith.constant 0.000000e+00 : f32
    %85 = vector.broadcast %cst_36 : f32 to vector<4x16xf32>
    %86 = arith.select %84, %79, %85 : vector<4x16xi1>, vector<4x16xf32>
    %cst_37 = arith.constant dense<0.000000e+00> : vector<4xf32>
    %87 = vector.multi_reduction <add>, %86, %cst_37 [1] : vector<4x16xf32> to vector<4xf32>
    %88 = vector.shape_cast %87 : vector<4xf32> to vector<4x1xf32>
    %cst_38 = arith.constant 2.000000e-01 : f32
    %89 = vector.broadcast %cst_38 : f32 to vector<4x1xf32>
    %90 = arith.mulf %88, %89 : vector<4x1xf32>
    %91 = vector.broadcast %90 : vector<4x1xf32> to vector<4x16xf32>
    %92 = arith.subf %79, %91 : vector<4x16xf32>
    %cst_39 = arith.constant 0.000000e+00 : f32
    %93 = vector.broadcast %cst_39 : f32 to vector<4x16xf32>
    %94 = arith.select %84, %92, %93 : vector<4x16xi1>, vector<4x16xf32>
    %cst_40 = arith.constant dense<0.000000e+00> : vector<4x4xf32>
    %95 = tpu.matmul %94, %94, %cst_40 {dimension_numbers = #tpu.dot_dimension_numbers<[1], [1], [0], [0], [0, 0, 1, 0], [], []>} : vector<4x16xf32>, vector<4x16xf32>, vector<4x4xf32> -> vector<4x4xf32>
    %cst_41 = arith.constant 0.000000e+00 : f32
    %96 = vector.broadcast %cst_41 : f32 to vector<4x4xf32>
    %97 = arith.select %2, %95, %96 : vector<4x4xi1>, vector<4x4xf32>
    %cst_42 = arith.constant dense<0.000000e+00> : vector<4xf32>
    %98 = vector.multi_reduction <add>, %97, %cst_42 [1] : vector<4x4xf32> to vector<4xf32>
    %99 = vector.shape_cast %98 : vector<4xf32> to vector<4x1xf32>
    %100 = math.rsqrt %99 : vector<4x1xf32>
    %cst_43 = arith.constant dense<0.000000e+00> : vector<4xf32>
    %101 = vector.multi_reduction <add>, %97, %cst_43 [0] : vector<4x4xf32> to vector<4xf32>
    %102 = vector.shape_cast %101 : vector<4xf32> to vector<1x4xf32>
    %103 = math.rsqrt %102 : vector<1x4xf32>
    %104 = vector.broadcast %100 : vector<4x1xf32> to vector<4x4xf32>
    %105 = arith.mulf %95, %104 : vector<4x4xf32>
    %106 = vector.broadcast %103 : vector<1x4xf32> to vector<4x4xf32>
    %107 = arith.mulf %105, %106 : vector<4x4xf32>
    %cst_44 = arith.constant -1.000000e+00 : f32
    %cst_45 = arith.constant 1.000000e+00 : f32
    %108 = vector.broadcast %cst_44 : f32 to vector<4x4xf32>
    %109 = arith.maximumf %108, %107 : vector<4x4xf32>
    %110 = vector.broadcast %cst_45 : f32 to vector<4x4xf32>
    %111 = arith.minimumf %110, %109 : vector<4x4xf32>
    %c0_46 = arith.constant 0 : index
    %c2 = arith.constant 2 : index
    %c0_47 = arith.constant 0 : index
    %c0_48 = arith.constant 0 : index
    %112 = vector.load %arg2[%c0_46, %c2, %c0_47, %c0_48] : memref<1x3x4x4xf32, #tpu.memory_space<vmem>>, vector<1x1x4x4xf32>
    %113 = vector.shape_cast %112 : vector<1x1x4x4xf32> to vector<4x4xf32>
    %114 = vector.shape_cast %111 : vector<4x4xf32> to vector<1x1x4x4xf32>
    tpu.vector_store %arg2[%c0_46, %c2, %c0_47, %c0_48], %114 {strides = array<i32>} : memref<1x3x4x4xf32, #tpu.memory_space<vmem>>, vector<1x1x4x4xf32>,
    return
  }
  func.func @transform_0(%arg0: i32) -> (i32, i32, i32) {
    %c0_i32 = arith.constant 0 : i32
    %c0_i32_0 = arith.constant 0 : i32
    %c0_i32_1 = arith.constant 0 : i32
    return %arg0, %c0_i32, %c0_i32_0 : i32, i32, i32
  }
  func.func @transform_1(%arg0: i32) -> (i32, i32, i32, i32) {
    %c0_i32 = arith.constant 0 : i32
    %c0_i32_0 = arith.constant 0 : i32
    %c0_i32_1 = arith.constant 0 : i32
    %c0_i32_2 = arith.constant 0 : i32
    return %arg0, %c0_i32, %c0_i32_0, %c0_i32_1 : i32, i32, i32, i32
  }
}

</mosaic_0001>

<llo_original>
// kernel: tpu_custom_call.1
$region0: #{tpu_custom_call.1}
  #allocation0 [shape = 'u32[]', space=smem, size = 0x4, offset = 0x4, fixed_abs, tag = 'smem constant byte address 0x4 - core index']
  #allocation1 [shape = 'u32[144,128]{1,0:T(1,128)}', space=vmem, size = 0x12000, scoped, tag = 'internal scratch']
  %s0 = inlined_call_operand.hbm [shape: f32[2,4,16], index: 0, kind: input, shape index: {}]
  %s1 = inlined_call_operand.hbm [shape: f32[2,3,4,4], index: 1, kind: output, shape index: {}]
  %s2 = sld [smem:[#allocation0]]
  $region41: #{tpu_custom_call.1} parent=0
    _
  %s4 = ssub.s32 1, %s2
  %s5 = scalar_select 0, %s4, %s2
  $region1: #{tpu_custom_call.1} parent=0
    #allocation2 [shape = 'u8[4096]{0}', space=vmem, size = 0x1000, scoped, tag = 'input window, operand 0']
    #allocation3 [shape = 's32[2]{0}', space=sflag, size = 0x8, scoped, tag = 'scoped memory for tpu_custom_call.1']
    #allocation4 [shape = 's32[2]{0}', space=sflag, size = 0x8, scoped, tag = 'scoped memory for tpu_custom_call.1']
    #allocation5 [shape = 'u8[12288]{0}', space=vmem, size = 0x3000, scoped, tag = 'output window, operand 0']
    %6 = vsyncpa [#allocation3], 0
    %s7 = scalar_lea.sflag [#allocation3], 1
    %8 = vsyncpa %s7, 0
    %9 = vsyncpa [#allocation4], 0
    %s10 = scalar_lea.sflag [#allocation4], 1
    %11 = vsyncpa %s10, 0
    loop: start=0, step=1, limit=4
    $region2: #{tpu_custom_call.1} parent=1 // loop_pre_header
      _
    $region3: #{tpu_custom_call.1} parent=1 // loop_header
      %s13 = sphi 0, %s17
      %p14 = scmp.ge.s32.totalorder %s13, 4
      %s23 = sphi 0, %s25
      %s26 = sphi 0, %s23
      %s27 = sphi 0, %s26
      %s43 = sphi 0, %s27
      %s49 = sphi 0, %s51
      %s52 = sphi 0, %s49
      %s53 = sphi 0, %s52
      %s69 = sphi 0, %s53
    $region4: #{tpu_custom_call.1} parent=1 // loop_header_branch
      %16 = sbr.rel (%p14) target = $region8
    $region5: #{tpu_custom_call.1} parent=1 // loop_body
      %s18 = ssub.s32 %s13, 1
      %s19 = ssub.s32 %s13, 2
      %s20 = sadd.s32 %s13, 1
      %s21 = ssub.s32 %s13, %s20
      %p22 = scmp.eq.s32.totalorder %s21, 0
      %s24 = sadd.s32 %s23, 1
      %s25 = scalar_select %p22, %s23, %s24
      %p28 = pneg %p22
      %p29 = scmp.eq.s32.totalorder %s13, 1
      %p30 = por %p28, %p29
      %p31 = scmp.ne.s32.totalorder %s23, %s26
      %p32 = scmp.eq.s32.totalorder %s13, 0
      %p33 = por %p31, %p32
      %p34 = scmp.ne.s32.totalorder %s23, %s26
      %p35 = scmp.eq.s32.totalorder %s18, 1
      %p36 = por %p34, %p35
      %p37 = scmp.ne.s32.totalorder %s26, %s27
      %p38 = scmp.eq.s32.totalorder %s18, 0
      %p39 = por %p37, %p38
      %p40 = scmp.ne.s32.totalorder %s26, %s27
      %p41 = scmp.eq.s32.totalorder %s19, 1
      %p42 = por %p40, %p41
      %p44 = scmp.ne.s32.totalorder %s27, %s43
      %p45 = scmp.eq.s32.totalorder %s19, 0
      %p46 = por %p44, %p45
      %s47 = ssub.s32 %s13, %s20
      %p48 = scmp.eq.s32.totalorder %s47, 0
      %s50 = sadd.s32 %s49, 1
      %s51 = scalar_select %p48, %s49, %s50
      %p54 = pneg %p48
      %p55 = scmp.eq.s32.totalorder %s13, 1
      %p56 = por %p54, %p55
      %p57 = scmp.ne.s32.totalorder %s49, %s52
      %p58 = scmp.eq.s32.totalorder %s13, 0
      %p59 = por %p57, %p58
      %p60 = scmp.ne.s32.totalorder %s49, %s52
      %p61 = scmp.eq.s32.totalorder %s18, 1
      %p62 = por %p60, %p61
      %p63 = scmp.ne.s32.totalorder %s52, %s53
      %p64 = scmp.eq.s32.totalorder %s18, 0
      %p65 = por %p63, %p64
      %p66 = scmp.ne.s32.totalorder %s52, %s53
      %p67 = scmp.eq.s32.totalorder %s19, 1
      %p68 = por %p66, %p67
      %p70 = scmp.ne.s32.totalorder %s53, %s69
      %p71 = scmp.eq.s32.totalorder %s19, 0
      %p72 = por %p70, %p71
      %p73 = scmp.le.s32.totalorder 1, %s13
      %p74 = scmp.lt.s32.totalorder %s13, 3
      %p75 = pnand %p73, %p74
      %p76 = pneg %p75
      // Predicated region
      $region9: #{tpu_custom_call.1} parent=5 // pred_check
        _
      $region10: #{tpu_custom_call.1} parent=5 // pred_check_branch
        %78 = sbr.rel (%p75) target = $region12
      $region11: #{tpu_custom_call.1} parent=5 // pred_region
        %s79 = ssub.s32 %s13, 1
      $region12: #{tpu_custom_call.1} parent=5 // pred_fallthru
        _
      %p80 = scmp.lt.s32.totalorder %s13, 2
      // Predicated region
      $region13: #{tpu_custom_call.1} parent=5 // pred_check
        %p81 = pneg %p80
      $region14: #{tpu_custom_call.1} parent=5 // pred_check_branch
        %83 = sbr.rel (%p81) target = $region16
      $region15: #{tpu_custom_call.1} parent=5 // pred_region
        // Predicated region
        $region17: #{tpu_custom_call.1} parent=15 // pred_check
          %p84 = pneg %p33
        $region18: #{tpu_custom_call.1} parent=15 // pred_check_branch
          %86 = sbr.rel (%p84) target = $region20
        $region19: #{tpu_custom_call.1} parent=15 // pred_region
          %s87 = sand.u32 %s23, 1
          %s88 = scalar_lea.sflag [#allocation3], %s87
          %s89 = sand.u32 %s23, 1
          %s90 = smul.addr %s89, 4
          %s91 = scalar_lea.vmem [#allocation2], %s90
          %s93 = ssub.s32 64, 64
          %94 = vsyncadd %s88, %s93
          %s95 = smul.addr %s13, 64
          %s96 = scalar_lea.hbm %s0, %s95
          %s98 = sshll.u32 %s91, 4
          %s99 = int_to_ptr.vmem [resolvable:$true] %s98
          %101 = dma.hbm_to_vmem [thread:$0]  %s96, 64, %s99, %s88
        $region20: #{tpu_custom_call.1} parent=15 // pred_fallthru
          _
      $region16: #{tpu_custom_call.1} parent=5 // pred_fallthru
        _
      %p102 = scmp.le.s32.totalorder 1, %s13
      %p103 = scmp.lt.s32.totalorder %s13, 3
      %p104 = pnand %p102, %p103
      %p105 = pneg %p104
      // Predicated region
      $region21: #{tpu_custom_call.1} parent=5 // pred_check
        _
      $region22: #{tpu_custom_call.1} parent=5 // pred_check_branch
        %107 = sbr.rel (%p104) target = $region24
      $region23: #{tpu_custom_call.1} parent=5 // pred_region
        %s108 = ssub.s32 %s13, 1
        %s109 = sand.u32 %s26, 1
        %s110 = scalar_lea.sflag [#allocation3], %s109
        %s111 = sand.u32 %s26, 1
        %s112 = smul.addr %s111, 4
        %s113 = scalar_lea.vmem [#allocation2], %s112
        // Predicated region
        $region25: #{tpu_custom_call.1} parent=23 // pred_check
          %p114 = pneg %p39
        $region26: #{tpu_custom_call.1} parent=23 // pred_check_branch
          %116 = sbr.rel (%p114) target = $region28
        $region27: #{tpu_custom_call.1} parent=23 // pred_region
          %117 = dma.done %s110, 64
        $region28: #{tpu_custom_call.1} parent=23 // pred_fallthru
          _
        %s118 = sand.u32 %s26, 1
        %s119 = scalar_lea.sflag [#allocation3], %s118
        %s120 = sand.u32 %s26, 1
        %s121 = smul.addr %s120, 4
        %s122 = scalar_lea.vmem [#allocation2], %s121
        %p123 = pneg %p39
        %p124 = pneg %p36
        %p125 = pneg %p65
        %p126 = pneg %p62
        %s127 = sand.u32 %s52, 1
        %s128 = scalar_lea.sflag [#allocation4], %s127
        %s129 = sand.u32 %s52, 1
        %s130 = smul.addr %s129, 12
        %s131 = scalar_lea.vmem [#allocation5], %s130
        %v132 = vlaneseq
        %v133 = vshrl.u32 %v132, 7
        %v134 = vlaneseq
        %v135 = vand.u32 %v134, 127
        %vm136 = vcmp.eq.s32.totalorder %v133, %v135
        %v137 = vld [vmem:[%s113] sm:$0xf]
        %vm138 = vcmp.ge.s32.totalorder %v135, 0
        %vm139 = vcmp.lt.s32.totalorder %v135, 6
        %vm140 = vmand %vm138, %vm139
        %v141 = vsel %vm140, %v137, 0.0
        %vm142 = vcmask 125952
        %v143 = vsel %vm142, %v141, 0.0
        %144 = vadd.xlane.f32.xlu0 %v143
        %v145 = vpop.xlane.xlu0 %144
        %v146 = vmul.f32 %v145, 0.16666667
        %v147 = vsub.f32 %v137, %v146
        %v148 = vsel %vm140, %v147, 0.0
        %vm149 = vcmask 130048
        %v151 = vsel %vm149, %v148, 0
        %153 = vmatprep.subr.mxu0 0.0
        %154 = vmatpush1.xpose.msra.mxu0 %v151
        %155 = vmatprep.subr.mxu0 0.0
        %156 = vmatpush1.xpose.msra.mxu0 0.0
        %157 = vmatprep.subr.mxu0 0.0
        %158 = vmatpush1.xpose.msra.mxu0 0.0
        %159 = vmatprep.subr.mxu0 0.0
        %160 = vmatpush1.xpose.msra.mxu0 0.0
        %161 = vmatprep.subr.mxu0 0.0
        %162 = vmatpush1.xpose.msra.mxu0 0.0
        %163 = vmatprep.subr.mxu0 0.0
        %164 = vmatpush1.xpose.msra.mxu0 0.0
        %165 = vmatprep.subr.mxu0 0.0
        %166 = vmatpush1.xpose.msra.mxu0 0.0
        %167 = vmatprep.subr.mxu0 0.0
        %168 = vmatpush1.xpose.msra.mxu0 0.0
        %169 = vmatprep.subr.mxu0 0.0
        %170 = vmatpush1.xpose.msra.mxu0 0.0
        %171 = vmatprep.subr.mxu0 0.0
        %172 = vmatpush1.xpose.msra.mxu0 0.0
        %173 = vmatprep.subr.mxu0 0.0
        %174 = vmatpush1.xpose.msra.mxu0 0.0
        %175 = vmatprep.subr.mxu0 0.0
        %176 = vmatpush1.xpose.msra.mxu0 0.0
        %177 = vmatprep.subr.mxu0 0.0
        %178 = vmatpush1.xpose.msra.mxu0 0.0
        %179 = vmatprep.subr.mxu0 0.0
        %180 = vmatpush1.xpose.msra.mxu0 0.0
        %181 = vmatprep.subr.mxu0 0.0
        %182 = vmatpush1.xpose.msra.mxu0 0.0
        %183 = vmatprep.subr.mxu0 0.0
        %184 = vmatpush1.xpose.msra.mxu0 0.0
        %185 = vmatprep.subr.mxu0 0.0
        %186 = vmatpush1.xpose.msra.mxu0 0.0
        %187 = vmatprep.subr.mxu0 0.0
        %188 = vmatpush1.xpose.msra.mxu0 0.0
        %189 = vmatprep.subr.mxu0 0.0
        %190 = vmatpush1.xpose.msra.mxu0 0.0
        %191 = vmatprep.subr.mxu0 0.0
        %192 = vmatpush1.xpose.msra.mxu0 0.0
        %193 = vmatprep.subr.mxu0 0.0
        %194 = vmatpush1.xpose.msra.mxu0 0.0
        %195 = vmatprep.subr.mxu0 0.0
        %196 = vmatpush1.xpose.msra.mxu0 0.0
        %197 = vmatprep.subr.mxu0 0.0
        %198 = vmatpush1.xpose.msra.mxu0 0.0
        %199 = vmatprep.subr.mxu0 0.0
        %200 = vmatpush1.xpose.msra.mxu0 0.0
        %201 = vmatprep.subr.mxu0 0.0
        %202 = vmatpush1.xpose.msra.mxu0 0.0
        %203 = vmatprep.subr.mxu0 0.0
        %204 = vmatpush1.xpose.msra.mxu0 0.0
        %205 = vmatprep.subr.mxu0 0.0
        %206 = vmatpush1.xpose.msra.mxu0 0.0
        %207 = vmatprep.subr.mxu0 0.0
        %208 = vmatpush1.xpose.msra.mxu0 0.0
        %209 = vmatprep.subr.mxu0 0.0
        %210 = vmatpush1.xpose.msra.mxu0 0.0
        %211 = vmatprep.subr.mxu0 0.0
        %212 = vmatpush1.xpose.msra.mxu0 0.0
        %213 = vmatprep.subr.mxu0 0.0
        %214 = vmatpush1.xpose.msra.mxu0 0.0
        %215 = vmatprep.subr.mxu0 0.0
        %216 = vmatpush1.xpose.msra.mxu0 0.0
        %217 = vmatprep.mubr.f32.mxu0 0.0
        %218 = vmatmul.mubr.f32.gmra.mrb[0].mxu0 %v151
        %v219 = vpop.f32.mrb[0].mxu0
        %v220 = vadd.f32 0.0, %v219
        %v221 = vpop.f32.mrb[0].mxu0
        %222 = vdwg.mxu0
        %v223 = vsel %vm136, %v220, 0.0
        %vm224 = vcmask 27648
        %v225 = vsel %vm224, %v223, 0.0
        %226 = vadd.xlane.f32.xlu0 %v225
        %v227 = vpop.xlane.xlu0 %226
        %v228 = vrsqrt.pop %v227
        %v229 = vrot.slane %v225, 4
        %v230 = vadd.f32 %v225, %v229
        %v231 = vrot.slane %v230, 2
        %v232 = vadd.f32 %v230, %v231
        %v233 = vrot.slane %v232, 1
        %v234 = vadd.f32 %v232, %v233
        %v235 = vrsqrt.pop %v234
        %v236 = vmul.f32 %v220, %v228
        %v237 = vmul.f32 %v236, %v235
        %v238 = vmax.f32 %v237, -1.0
        %v239 = vmin.f32 %v238, 1.0
        %240 = vst.msk [vmem:[%s131] sm:$0xf] %vm224, %v239
        %v241 = vld [vmem:[%s113] sm:$0xf]
        %vm242 = vcmp.ge.s32.totalorder %v135, 6
        %vm243 = vcmp.lt.s32.totalorder %v135, 11
        %vm244 = vmand %vm242, %vm243
        %v245 = vsel %vm244, %v241, 0.0
        %v246 = vsel %vm142, %v245, 0.0
        %247 = vadd.xlane.f32.xlu0 %v246
        %v248 = vpop.xlane.xlu0 %247
        %v249 = vmul.f32 %v248, 0.2
        %v250 = vsub.f32 %v241, %v249
        %v251 = vsel %vm244, %v250, 0.0
        %v253 = vsel %vm149, %v251, 0
        %255 = vmatprep.subr.mxu0 0.0
        %256 = vmatpush1.xpose.msra.mxu0 %v253
        %257 = vmatprep.subr.mxu0 0.0
        %258 = vmatpush1.xpose.msra.mxu0 0.0
        %259 = vmatprep.subr.mxu0 0.0
        %260 = vmatpush1.xpose.msra.mxu0 0.0
        %261 = vmatprep.subr.mxu0 0.0
        %262 = vmatpush1.xpose.msra.mxu0 0.0
        %263 = vmatprep.subr.mxu0 0.0
        %264 = vmatpush1.xpose.msra.mxu0 0.0
        %265 = vmatprep.subr.mxu0 0.0
        %266 = vmatpush1.xpose.msra.mxu0 0.0
        %267 = vmatprep.subr.mxu0 0.0
        %268 = vmatpush1.xpose.msra.mxu0 0.0
        %269 = vmatprep.subr.mxu0 0.0
        %270 = vmatpush1.xpose.msra.mxu0 0.0
        %271 = vmatprep.subr.mxu0 0.0
        %272 = vmatpush1.xpose.msra.mxu0 0.0
        %273 = vmatprep.subr.mxu0 0.0
        %274 = vmatpush1.xpose.msra.mxu0 0.0
        %275 = vmatprep.subr.mxu0 0.0
        %276 = vmatpush1.xpose.msra.mxu0 0.0
        %277 = vmatprep.subr.mxu0 0.0
        %278 = vmatpush1.xpose.msra.mxu0 0.0
        %279 = vmatprep.subr.mxu0 0.0
        %280 = vmatpush1.xpose.msra.mxu0 0.0
        %281 = vmatprep.subr.mxu0 0.0
        %282 = vmatpush1.xpose.msra.mxu0 0.0
        %283 = vmatprep.subr.mxu0 0.0
        %284 = vmatpush1.xpose.msra.mxu0 0.0
        %285 = vmatprep.subr.mxu0 0.0
        %286 = vmatpush1.xpose.msra.mxu0 0.0
        %287 = vmatprep.subr.mxu0 0.0
        %288 = vmatpush1.xpose.msra.mxu0 0.0
        %289 = vmatprep.subr.mxu0 0.0
        %290 = vmatpush1.xpose.msra.mxu0 0.0
        %291 = vmatprep.subr.mxu0 0.0
        %292 = vmatpush1.xpose.msra.mxu0 0.0
        %293 = vmatprep.subr.mxu0 0.0
        %294 = vmatpush1.xpose.msra.mxu0 0.0
        %295 = vmatprep.subr.mxu0 0.0
        %296 = vmatpush1.xpose.msra.mxu0 0.0
        %297 = vmatprep.subr.mxu0 0.0
        %298 = vmatpush1.xpose.msra.mxu0 0.0
        %299 = vmatprep.subr.mxu0 0.0
        %300 = vmatpush1.xpose.msra.mxu0 0.0
        %301 = vmatprep.subr.mxu0 0.0
        %302 = vmatpush1.xpose.msra.mxu0 0.0
        %303 = vmatprep.subr.mxu0 0.0
        %304 = vmatpush1.xpose.msra.mxu0 0.0
        %305 = vmatprep.subr.mxu0 0.0
        %306 = vmatpush1.xpose.msra.mxu0 0.0
        %307 = vmatprep.subr.mxu0 0.0
        %308 = vmatpush1.xpose.msra.mxu0 0.0
        %309 = vmatprep.subr.mxu0 0.0
        %310 = vmatpush1.xpose.msra.mxu0 0.0
        %311 = vmatprep.subr.mxu0 0.0
        %312 = vmatpush1.xpose.msra.mxu0 0.0
        %313 = vmatprep.subr.mxu0 0.0
        %314 = vmatpush1.xpose.msra.mxu0 0.0
        %315 = vmatprep.subr.mxu0 0.0
        %316 = vmatpush1.xpose.msra.mxu0 0.0
        %317 = vmatprep.subr.mxu0 0.0
        %318 = vmatpush1.xpose.msra.mxu0 0.0
        %319 = vmatprep.mubr.f32.mxu0 0.0
        %320 = vmatmul.mubr.f32.gmra.mrb[0].mxu0 %v253
        %v321 = vpop.f32.mrb[0].mxu0
        %v322 = vadd.f32 0.0, %v321
        %v323 = vpop.f32.mrb[0].mxu0
        %324 = vdwg.mxu0
        %v325 = vsel %vm136, %v322, 0.0
        %v326 = vsel %vm224, %v325, 0.0
        %327 = vadd.xlane.f32.xlu0 %v326
        %v328 = vpop.xlane.xlu0 %327
        %v329 = vrsqrt.pop %v328
        %v330 = vrot.slane %v326, 4
        %v331 = vadd.f32 %v326, %v330
        %v332 = vrot.slane %v331, 2
        %v333 = vadd.f32 %v331, %v332
        %v334 = vrot.slane %v333, 1
        %v335 = vadd.f32 %v333, %v334
        %v336 = vrsqrt.pop %v335
        %v337 = vmul.f32 %v322, %v329
        %v338 = vmul.f32 %v337, %v336
        %v339 = vmax.f32 %v338, -1.0
        %v340 = vmin.f32 %v339, 1.0
        %s341 = scalar_lea.vmem %s131, 4 [#allocation5]
        %342 = vst.msk [vmem:[%s341] sm:$0xf] %vm224, %v340
        %v343 = vld [vmem:[%s113] sm:$0xf]
        %vm344 = vcmp.ge.s32.totalorder %v135, 11
        %vm345 = vcmp.lt.s32.totalorder %v135, 16
        %vm346 = vmand %vm344, %vm345
        %v347 = vsel %vm346, %v343, 0.0
        %v348 = vsel %vm142, %v347, 0.0
        %349 = vadd.xlane.f32.xlu0 %v348
        %v350 = vpop.xlane.xlu0 %349
        %v351 = vmul.f32 %v350, 0.2
        %v352 = vsub.f32 %v343, %v351
        %v353 = vsel %vm346, %v352, 0.0
        %v355 = vsel %vm149, %v353, 0
        %357 = vmatprep.subr.mxu0 0.0
        %358 = vmatpush1.xpose.msra.mxu0 %v355
        %359 = vmatprep.subr.mxu0 0.0
        %360 = vmatpush1.xpose.msra.mxu0 0.0
        %361 = vmatprep.subr.mxu0 0.0
        %362 = vmatpush1.xpose.msra.mxu0 0.0
        %363 = vmatprep.subr.mxu0 0.0
        %364 = vmatpush1.xpose.msra.mxu0 0.0
        %365 = vmatprep.subr.mxu0 0.0
        %366 = vmatpush1.xpose.msra.mxu0 0.0
        %367 = vmatprep.subr.mxu0 0.0
        %368 = vmatpush1.xpose.msra.mxu0 0.0
        %369 = vmatprep.subr.mxu0 0.0
        %370 = vmatpush1.xpose.msra.mxu0 0.0
        %371 = vmatprep.subr.mxu0 0.0
        %372 = vmatpush1.xpose.msra.mxu0 0.0
        %373 = vmatprep.subr.mxu0 0.0
        %374 = vmatpush1.xpose.msra.mxu0 0.0
        %375 = vmatprep.subr.mxu0 0.0
        %376 = vmatpush1.xpose.msra.mxu0 0.0
        %377 = vmatprep.subr.mxu0 0.0
        %378 = vmatpush1.xpose.msra.mxu0 0.0
        %379 = vmatprep.subr.mxu0 0.0
        %380 = vmatpush1.xpose.msra.mxu0 0.0
        %381 = vmatprep.subr.mxu0 0.0
        %382 = vmatpush1.xpose.msra.mxu0 0.0
        %383 = vmatprep.subr.mxu0 0.0
        %384 = vmatpush1.xpose.msra.mxu0 0.0
        %385 = vmatprep.subr.mxu0 0.0
        %386 = vmatpush1.xpose.msra.mxu0 0.0
        %387 = vmatprep.subr.mxu0 0.0
        %388 = vmatpush1.xpose.msra.mxu0 0.0
        %389 = vmatprep.subr.mxu0 0.0
        %390 = vmatpush1.xpose.msra.mxu0 0.0
        %391 = vmatprep.subr.mxu0 0.0
        %392 = vmatpush1.xpose.msra.mxu0 0.0
        %393 = vmatprep.subr.mxu0 0.0
        %394 = vmatpush1.xpose.msra.mxu0 0.0
        %395 = vmatprep.subr.mxu0 0.0
        %396 = vmatpush1.xpose.msra.mxu0 0.0
        %397 = vmatprep.subr.mxu0 0.0
        %398 = vmatpush1.xpose.msra.mxu0 0.0
        %399 = vmatprep.subr.mxu0 0.0
        %400 = vmatpush1.xpose.msra.mxu0 0.0
        %401 = vmatprep.subr.mxu0 0.0
        %402 = vmatpush1.xpose.msra.mxu0 0.0
        %403 = vmatprep.subr.mxu0 0.0
        %404 = vmatpush1.xpose.msra.mxu0 0.0
        %405 = vmatprep.subr.mxu0 0.0
        %406 = vmatpush1.xpose.msra.mxu0 0.0
        %407 = vmatprep.subr.mxu0 0.0
        %408 = vmatpush1.xpose.msra.mxu0 0.0
        %409 = vmatprep.subr.mxu0 0.0
        %410 = vmatpush1.xpose.msra.mxu0 0.0
        %411 = vmatprep.subr.mxu0 0.0
        %412 = vmatpush1.xpose.msra.mxu0 0.0
        %413 = vmatprep.subr.mxu0 0.0
        %414 = vmatpush1.xpose.msra.mxu0 0.0
        %415 = vmatprep.subr.mxu0 0.0
        %416 = vmatpush1.xpose.msra.mxu0 0.0
        %417 = vmatprep.subr.mxu0 0.0
        %418 = vmatpush1.xpose.msra.mxu0 0.0
        %419 = vmatprep.subr.mxu0 0.0
        %420 = vmatpush1.xpose.msra.mxu0 0.0
        %421 = vmatprep.mubr.f32.mxu0 0.0
        %422 = vmatmul.mubr.f32.gmra.mrb[0].mxu0 %v355
        %v423 = vpop.f32.mrb[0].mxu0
        %v424 = vadd.f32 0.0, %v423
        %v425 = vpop.f32.mrb[0].mxu0
        %426 = vdwg.mxu0
        %v427 = vsel %vm136, %v424, 0.0
        %v428 = vsel %vm224, %v427, 0.0
        %429 = vadd.xlane.f32.xlu0 %v428
        %v430 = vpop.xlane.xlu0 %429
        %v431 = vrsqrt.pop %v430
        %v432 = vrot.slane %v428, 4
        %v433 = vadd.f32 %v428, %v432
        %v434 = vrot.slane %v433, 2
        %v435 = vadd.f32 %v433, %v434
        %v436 = vrot.slane %v435, 1
        %v437 = vadd.f32 %v435, %v436
        %v438 = vrsqrt.pop %v437
        %v439 = vmul.f32 %v424, %v431
        %v440 = vmul.f32 %v439, %v438
        %v441 = vmax.f32 %v440, -1.0
        %v442 = vmin.f32 %v441, 1.0
        %s443 = scalar_lea.vmem %s131, 8 [#allocation5]
        %444 = vst.msk [vmem:[%s443] sm:$0xf] %vm224, %v442
        %s445 = sand.u32 %s52, 1
        %s446 = scalar_lea.sflag [#allocation4], %s445
        %s447 = sand.u32 %s52, 1
        %s448 = smul.addr %s447, 12
        %s449 = scalar_lea.vmem [#allocation5], %s448
        // Predicated region
        $region29: #{tpu_custom_call.1} parent=23 // pred_check
          %p450 = pneg %p62
        $region30: #{tpu_custom_call.1} parent=23 // pred_check_branch
          %452 = sbr.rel (%p450) target = $region32
        $region31: #{tpu_custom_call.1} parent=23 // pred_region
          %s454 = ssub.s32 192, 192
          %455 = vsyncadd %s446, %s454
          %s456 = smul.addr %s18, 3
          %s457 = smul.addr %s456, 64
          %s458 = scalar_lea.hbm %s1, %s457
          %s459 = sshll.u32 %s449, 4
          %s460 = int_to_ptr.vmem [resolvable:$true] %s459
          %465 = dma.vmem_to_hbm [thread:$0]  %s460, 192, %s458, %s446, 64, 64, 4
        $region32: #{tpu_custom_call.1} parent=23 // pred_fallthru
          _
      $region24: #{tpu_custom_call.1} parent=5 // pred_fallthru
        _
      %p466 = scmp.le.s32.totalorder 2, %s13
      // Predicated region
      $region33: #{tpu_custom_call.1} parent=5 // pred_check
        %p467 = pneg %p466
      $region34: #{tpu_custom_call.1} parent=5 // pred_check_branch
        %469 = sbr.rel (%p467) target = $region36
      $region35: #{tpu_custom_call.1} parent=5 // pred_region
        %s470 = ssub.s32 %s13, 2
        // Predicated region
        $region37: #{tpu_custom_call.1} parent=35 // pred_check
          %p471 = pneg %p68
        $region38: #{tpu_custom_call.1} parent=35 // pred_check_branch
          %473 = sbr.rel (%p471) target = $region40
        $region39: #{tpu_custom_call.1} parent=35 // pred_region
          %s474 = sand.u32 %s53, 1
          %s475 = scalar_lea.sflag [#allocation4], %s474
          %s476 = sand.u32 %s53, 1
          %s477 = smul.addr %s476, 12
          %s478 = scalar_lea.vmem [#allocation5], %s477
          %479 = dma.done %s475, 192
        $region40: #{tpu_custom_call.1} parent=35 // pred_fallthru
          _
      $region36: #{tpu_custom_call.1} parent=5 // pred_fallthru
        _
    $region6: #{tpu_custom_call.1} parent=1 // loop_footer
      %s17 = sadd.s32 1, %s13
    $region7: #{tpu_custom_call.1} parent=1 // loop_footer_branch
      %12 = sbr.rel target = $region3
    $region8: #{tpu_custom_call.1} parent=1 // loop_exit
      _
    %480 = vsyncpa [#allocation3], 1
    %s481 = scalar_lea.sflag [#allocation3], 1
    %482 = vsyncpa %s481, 1
    %483 = vsyncpa [#allocation4], 1
    %s484 = scalar_lea.sflag [#allocation4], 1
    %485 = vsyncpa %s484, 1

</llo_original>
